<compile_context>
chip_gen: v5e
topology: v5e:2x2
jax: 0.10.0
libtpu: 0.0.40
codegen_flags: <defaults>
</compile_context>

<pallas_src>
import jax
import jax.numpy as jnp
from jax.experimental import pallas as pl
from jax.experimental.pallas import tpu as pltpu


def _abs_kernel(x_ref, o_ref):
    # Elementwise |x| on the current VMEM tile (VPU work).
    o_ref[...] = jnp.abs(x_ref[...])


_LANE_CANDIDATES = (8192, 4096, 2048, 1024, 512, 256, 128)


def absolute(
    x: jax.Array,
    *,
    block_bytes: int = 2 * 1024 * 1024,   # ~2 MiB/block: near HBM roofline, VMEM-safe on all gens
    min_kernel_elems: int = 65536,        # below this, XLA's fused abs beats kernel launch overhead
) -> jax.Array:
    """Elementwise absolute value via a Pallas TPU kernel (torch.abs semantics)."""
    orig_shape = x.shape
    n = x.size

    # Dtypes whose |x| changes dtype/needs special handling (complex -> real), or trivial sizes:
    # let XLA handle them directly.
    if n == 0 or jnp.issubdtype(x.dtype, jnp.complexfloating) or x.dtype == jnp.bool_:
        return jnp.abs(x)

    # Fast path: tiny tensors — pallas_call launch + layout plumbing would dominate.
    if n < min_kernel_elems:
        return jnp.abs(x)

    itemsize = jnp.dtype(x.dtype).itemsize
    # Native packed sublane count per dtype width (f32:8, bf16:16, int8/fp8:32).
    sub = {4: 8, 2: 16, 1: 32}.get(itemsize, 8)

    # --- Choose lane width W (last dim): widest candidate that divides n so no padding
    #     is needed; prefer row counts that are already sublane-aligned. -----------------
    W = None
    for w in _LANE_CANDIDATES:
        if n % w == 0 and (n // w) % sub == 0:
            W = w
            break
    if W is None:
        for w in _LANE_CANDIDATES:
            if n % w == 0:
                W = w
                break
    if W is None:
        W = 128  # non-divisible size: padded fallback path

    rows = -(-n // W)  # ceil

    # --- Choose tile rows tr: ~block_bytes per block, multiple of `sub`. ----------------
    tr_cap = max(sub, (block_bytes // (W * itemsize)) // sub * sub)

    if rows <= tr_cap:
        if rows % (2 * sub) == 0:
            # Even 2-way split with no padding: gives both v7x TensorCores a block.
            tr = rows // 2
        else:
            tr = -(-rows // sub) * sub  # single block covering (sublane-rounded) rows
    else:
        # Prefer a tile that divides `rows` exactly (no padding, unmasked full blocks).
        tr = 0
        for d in range(tr_cap // sub, 0, -1):
            if rows % (d * sub) == 0:
                tr = d * sub
                break
        if tr == 0 or tr * W * itemsize < block_bytes // 4:
            # Degenerate divisor (e.g. prime row count): accept at most one block of
            # tail padding instead of tiny tiles.
            tr = tr_cap

    rows_p = -(-rows // tr) * tr
    total_p = rows_p * W
    pad = total_p - n

    flat = x.reshape(-1)
    if pad:
        flat = jnp.pad(flat, (0, pad))
    x2d = flat.reshape(rows_p, W)

    grid = (rows_p // tr,)

    out2d = pl.pallas_call(
        _abs_kernel,
        out_shape=jax.ShapeDtypeStruct((rows_p, W), x.dtype),
        grid_spec=pltpu.PrefetchScalarGridSpec(
            num_scalar_prefetch=0,
            grid=grid,
            in_specs=[pl.BlockSpec((tr, W), lambda i: (i, 0))],
            out_specs=pl.BlockSpec((tr, W), lambda i: (i, 0)),
        ),
        compiler_params=pltpu.CompilerParams(
            dimension_semantics=("parallel",),
            # Double-buffered in+out at ~2 MiB/block = ~8 MiB resident; 32 MiB scoped
            # limit gives headroom on v5e (default 16 MiB) and is safe on v6e/v7x.
            vmem_limit_bytes=32 * 1024 * 1024,
        ),
    )(x2d)

    if pad:
        out_flat = out2d.reshape(-1)[:n]
    else:
        out_flat = out2d.reshape(-1)
    return out_flat.reshape(orig_shape)


if __name__ == "__main__":
    key = jax.random.PRNGKey(0)
    k1, k2, k3 = jax.random.split(key, 3)

    # Spec-shaped NCHW input (batch=2, channels=4, spatial=16x16).
    x_small = jax.random.normal(k1, (2, 4, 16, 16), dtype=jnp.float32)

    # Default path for the tiny spec input (fast path, semantics identical).
    y_small = absolute(x_small)
    # Also force the Pallas kernel on the spec shape (single-block path).
    y_small_kernel = absolute(x_small, min_kernel_elems=0)

    # Larger input: exercises the wide-lane, multi-step grid path (grid >= 2).
    x_big = jax.random.normal(k2, (4, 16, 64, 64), dtype=jnp.float32)
    y_big = absolute(x_big)

    # Odd, non-divisible size: exercises the padded fallback path.
    x_odd = jax.random.normal(k3, (3, 5, 7, 11), dtype=jnp.float32)
    y_odd = absolute(x_odd, min_kernel_elems=0)

    jax.block_until_ready((y_small, y_small_kernel, y_big, y_odd))

    # Correctness checks against plain JAX reference.
    assert y_small.shape == x_small.shape and y_small.dtype == x_small.dtype
    assert jnp.array_equal(y_small, jnp.abs(x_small)), "mismatch (fast path)"
    assert jnp.array_equal(y_small_kernel, jnp.abs(x_small)), "mismatch (kernel, small)"
    assert y_big.shape == x_big.shape and jnp.array_equal(y_big, jnp.abs(x_big)), "mismatch (kernel, big)"
    assert y_odd.shape == x_odd.shape and jnp.array_equal(y_odd, jnp.abs(x_odd)), "mismatch (kernel, padded)"

    print("KERNEL_OK")
</pallas_src>

<mosaic_0001>
module attributes {stable_mosaic.version = 11 : i64} {
  func.func @_abs_kernel(%arg0: i32, %arg1: memref<8x256xf32, #tpu.memory_space<vmem>>, %arg2: memref<8x256xf32, #tpu.memory_space<vmem>>) attributes {dimension_semantics = [#tpu.dimension_semantics<parallel>], iteration_bounds = array<i64: 1>, scalar_prefetch = 0 : i64, scratch_operands = 0 : i64, tpu.core_type = #tpu.core_type<tc>, window_params = [{transform_indices = @transform_0, window_bounds = array<i64: 8, 256>}, {transform_indices = @transform_1, window_bounds = array<i64: 8, 256>}]} {
    %c0 = arith.constant 0 : index
    %c0_0 = arith.constant 0 : index
    %0 = vector.load %arg1[%c0, %c0_0] : memref<8x256xf32, #tpu.memory_space<vmem>>, vector<8x256xf32>
    %1 = math.absf %0 : vector<8x256xf32>
    %c0_1 = arith.constant 0 : index
    %c0_2 = arith.constant 0 : index
    %2 = vector.load %arg2[%c0_1, %c0_2] : memref<8x256xf32, #tpu.memory_space<vmem>>, vector<8x256xf32>
    tpu.vector_store %arg2[%c0_1, %c0_2], %1 {strides = array<i32>} : memref<8x256xf32, #tpu.memory_space<vmem>>, vector<8x256xf32>,
    return
  }
  func.func @transform_0(%arg0: i32) -> (i32, i32) {
    %c0_i32 = arith.constant 0 : i32
    %c0_i32_0 = arith.constant 0 : i32
    return %arg0, %c0_i32 : i32, i32
  }
  func.func @transform_1(%arg0: i32) -> (i32, i32) {
    %c0_i32 = arith.constant 0 : i32
    %c0_i32_0 = arith.constant 0 : i32
    return %arg0, %c0_i32 : i32, i32
  }
}

</mosaic_0001>

<llo_original>
// kernel: tpu_custom_call.1
$region0: #{tpu_custom_call.1}
  #allocation0 [shape = 'u32[]', space=smem, size = 0x4, offset = 0x4, fixed_abs, tag = 'smem constant byte address 0x4 - core index']
  #allocation1 [shape = 'u32[72,128]{1,0:T(1,128)}', space=vmem, size = 0x9000, scoped, tag = 'internal scratch']
  %s0 = inlined_call_operand.hbm [shape: f32[8,256], index: 0, kind: input, shape index: {}]
  %s1 = inlined_call_operand.hbm [shape: f32[8,256], index: 1, kind: output, shape index: {}]
  %s2 = sld [smem:[#allocation0]]
  $region18: #{tpu_custom_call.1} parent=0
    _
  %s4 = ssub.s32 1, %s2
  %s5 = scalar_select 0, %s4, %s2
  $region1: #{tpu_custom_call.1} parent=0
    #allocation2 [shape = 'u8[8192]{0}', space=vmem, size = 0x2000, scoped, tag = 'input window, operand 0, single buffered']
    #allocation3 [shape = 's32[1]{0}', space=sflag, size = 0x4, scoped, tag = 'scoped memory for tpu_custom_call.1']
    #allocation4 [shape = 's32[1]{0}', space=sflag, size = 0x4, scoped, tag = 'scoped memory for tpu_custom_call.1']
    #allocation5 [shape = 'u8[8192]{0}', space=vmem, size = 0x2000, scoped, tag = 'output window, operand 0, single buffered']
    %6 = vsyncpa [#allocation3], 0
    %7 = vsyncpa [#allocation4], 0
    // Predicated region
    $region2: #{tpu_custom_call.1} parent=1 // pred_check
      _
    $region3: #{tpu_custom_call.1} parent=1 // pred_check_branch
      %9 = sbr.rel (0) target = $region5
    $region4: #{tpu_custom_call.1} parent=1 // pred_region
      %11 = vsyncadd [#allocation3], 0
      %s13 = sshll.u32 %s0, 4
      %s14 = int_to_ptr.hbm [resolvable:$true] %s13
      %s15 = sshll.u32 [#allocation2], 4
      %s16 = int_to_ptr.vmem [resolvable:$true] %s15
      %18 = dma.hbm_to_vmem [thread:$0]  %s14, 256, %s16, [#allocation3]
    $region5: #{tpu_custom_call.1} parent=1 // pred_fallthru
      _
    // Predicated region
    $region6: #{tpu_custom_call.1} parent=1 // pred_check
      _
    $region7: #{tpu_custom_call.1} parent=1 // pred_check_branch
      %20 = sbr.rel (0) target = $region9
    $region8: #{tpu_custom_call.1} parent=1 // pred_region
      %22 = dma.done [#allocation3], 256
    $region9: #{tpu_custom_call.1} parent=1 // pred_fallthru
      _
    %v23 = vld [vmem:[#allocation2] sm:$0xff]
    %v24 = vld [vmem:[#allocation2 + $0x8] sm:$0xff]
    %v25 = vand.u32 2147483647, %v23
    %v26 = vand.u32 2147483647, %v24
    %27 = vst [vmem:[#allocation5] sm:$0xff] %v25
    %28 = vst [vmem:[#allocation5 + $0x8] sm:$0xff] %v26
    // Predicated region
    $region10: #{tpu_custom_call.1} parent=1 // pred_check
      _
    $region11: #{tpu_custom_call.1} parent=1 // pred_check_branch
      %30 = sbr.rel (0) target = $region13
    $region12: #{tpu_custom_call.1} parent=1 // pred_region
      %32 = vsyncadd [#allocation4], 0
      %s34 = sshll.u32 [#allocation5], 4
      %s35 = int_to_ptr.vmem [resolvable:$true] %s34
      %s36 = sshll.u32 %s1, 4
      %s37 = int_to_ptr.hbm [resolvable:$true] %s36
      %39 = dma.vmem_to_hbm [thread:$0]  %s35, 256, %s37, [#allocation4]
    $region13: #{tpu_custom_call.1} parent=1 // pred_fallthru
      _
    // Predicated region
    $region14: #{tpu_custom_call.1} parent=1 // pred_check
      _
    $region15: #{tpu_custom_call.1} parent=1 // pred_check_branch
      %41 = sbr.rel (0) target = $region17
    $region16: #{tpu_custom_call.1} parent=1 // pred_region
      %43 = dma.done [#allocation4], 256
    $region17: #{tpu_custom_call.1} parent=1 // pred_fallthru
      _
    %44 = vsyncpa [#allocation3], 1
    %45 = vsyncpa [#allocation4], 1

</llo_original>
